<compile_context>
chip_gen: v7x
topology: tpu7x:2x2x1
jax: 0.10.0
libtpu: 0.0.40
codegen_flags: <defaults>
</compile_context>

<pallas_src>
import functools
import math

import jax
import jax.numpy as jnp
from jax import lax
from jax.experimental import pallas as pl
from jax.experimental.pallas import tpu as pltpu


def _round_up(x: int, m: int) -> int:
    return (x + m - 1) // m * m


def _vmem_capacity_bytes() -> int:
    try:
        return int(pltpu.get_tpu_info().vmem_capacity_bytes)
    except Exception:
        return 128 * 2**20  # v5e/v6e assumption if the query is unavailable


def _vmem_limit_bytes(tq: int, tkv: int, d_in_p: int, d_out_p: int,
                      cbytes: int) -> int:
    """Per-generation VMEM budget: 2x the estimated footprint, capped at 80%
    of physical VMEM (leaves compiler-scratch headroom, esp. on v7x)."""
    cap = _vmem_capacity_bytes()
    ceiling = int(cap * 0.8)
    f32 = 4
    # attention kernel (dominant): x tile, resident W_q, double-buffered K/V
    # and bias tiles, output tile, q/m/l/acc scratch, score/exp temporaries.
    need_attn = (2 * tq * d_in_p * cbytes
                 + d_in_p * d_out_p * cbytes
                 + 2 * 2 * tkv * d_out_p * cbytes
                 + 2 * tkv * f32
                 + 2 * tq * d_out_p * f32
                 + tq * d_out_p * (cbytes + f32) + 2 * tq * f32
                 + 4 * tq * tkv * f32)
    # KV-projection kernel: x tile, fused [Wk|Wv], two output tiles.
    need_proj = (2 * tq * d_in_p * cbytes
                 + d_in_p * 2 * d_out_p * cbytes
                 + 4 * tq * d_out_p * cbytes
                 + 2 * tq * 2 * d_out_p * f32)
    need = max(need_attn, need_proj)
    return int(min(ceiling, max(32 * 2**20, 2 * need)))


# ---------------------------------------------------------------------------
# Kernel 1: fused KV projection    [K|V] = x @ [W_k | W_v]   (compute_dtype out)
# ---------------------------------------------------------------------------
def _kv_proj_kernel(x_ref, w_ref, k_ref, v_ref, *, d_out_p):
    kv = jnp.dot(x_ref[...], w_ref[...], preferred_element_type=jnp.float32)
    k_ref[...] = kv[:, :d_out_p].astype(k_ref.dtype)
    v_ref[...] = kv[:, d_out_p:].astype(v_ref.dtype)


# ---------------------------------------------------------------------------
# Kernel 2: flash-style attention; Q projected in-kernel, KV tiled over grid
# ---------------------------------------------------------------------------
def _flash_attn_kernel(x_ref, wq_ref, k_ref, v_ref, bias_ref, o_ref,
                       q_sc, m_sc, l_sc, acc_sc, *, approx_recip):
    kv_i = pl.program_id(1)

    @pl.when(kv_i == 0)
    def _init():
        # Q projection once per query tile (1/sqrt(d_out) already folded into W_q).
        q_sc[...] = jnp.dot(x_ref[...], wq_ref[...],
                            preferred_element_type=jnp.float32
                            ).astype(q_sc.dtype)
        m_sc[...] = jnp.full(m_sc.shape, -jnp.inf, dtype=m_sc.dtype)
        l_sc[...] = jnp.zeros(l_sc.shape, dtype=l_sc.dtype)
        acc_sc[...] = jnp.zeros(acc_sc.shape, dtype=acc_sc.dtype)

    # scores = q @ k.T without materializing a transpose (contract dim1 vs dim1).
    s = lax.dot_general(q_sc[...], k_ref[...],
                        dimension_numbers=(((1,), (1,)), ((), ())),
                        preferred_element_type=jnp.float32)      # (TQ, TKV) f32
    s = s + bias_ref[...]          # additive key mask (0 / -1e30), applied in f32

    # Online softmax (all math f32; v5e has no bf16 VPU/EUP).
    m_prev = m_sc[...]
    m_new = jnp.maximum(m_prev, jnp.max(s, axis=-1, keepdims=True))
    alpha = jnp.exp(m_prev - m_new)
    e = jnp.exp(s - m_new)
    l_sc[...] = alpha * l_sc[...] + jnp.sum(e, axis=-1, keepdims=True)
    acc_sc[...] = alpha * acc_sc[...] + jnp.dot(
        e.astype(v_ref.dtype), v_ref[...], preferred_element_type=jnp.float32)
    m_sc[...] = m_new

    @pl.when(kv_i == pl.num_programs(1) - 1)
    def _finalize():
        # Normalize AFTER the PV matmul: one (TQ, D) multiply instead of (TQ, S).
        o_ref[...] = (acc_sc[...] *
                      pl.reciprocal(l_sc[...], approx=approx_recip)
                      ).astype(o_ref.dtype)


# ---------------------------------------------------------------------------
# Wrapper
# ---------------------------------------------------------------------------
def self_attention_v1(x, w_query, w_key, w_value, *,
                      compute_dtype=jnp.float32, tq=None, kv_block=512):
    """Pallas equivalent of SelfAttention_v1.forward.

    x:        (seq_len, d_in) f32
    w_*:      (d_in, d_out)   f32
    returns:  (seq_len, d_out) f32

    compute_dtype=jnp.bfloat16 feeds the MXU bf16 operands with f32
    accumulation (recommended on v5e, whose MXU has no native f32 path);
    jnp.float32 matches the module numerics to ~1e-5 (modulo f32 MXU
    emulation vs. XLA HIGHEST at large all-positive accumulations).
    """
    f32 = jnp.float32
    x = x.astype(f32)
    seq_len, d_in = x.shape
    d_out = w_key.shape[-1]
    scale = 1.0 / math.sqrt(float(d_out))

    compute_dtype = jnp.dtype(compute_dtype)
    exact = compute_dtype == jnp.dtype(jnp.float32)
    approx_recip = not exact
    cbytes = compute_dtype.itemsize

    # ---- padded / tiled sizes ------------------------------------------------
    d_in_p = _round_up(d_in, 128)
    d_out_p = _round_up(d_out, 128)   # lane-dense; already 256-aligned whenever
    #                                   d_out is, which keeps v6e/v7x MXU full.

    vmem_cap = _vmem_capacity_bytes()
    if tq is None:
        if seq_len <= 256:
            tq = _round_up(max(seq_len, 8), 8)
        else:
            tq = 512 if vmem_cap >= 100 * 2**20 else 256   # v6e: bigger TQ
    tq = max(8, _round_up(int(tq), 8))

    if seq_len <= max(1024, tq):
        # Short/medium sequences: single KV block (resident K/V, one pass).
        s_pad = _round_up(seq_len, tq)
        tkv = s_pad
    else:
        # Long sequences: flash-style KV tiling (VMEM independent of S).
        tkv = _round_up(int(kv_block), 128)
        align = (tq * tkv) // math.gcd(tq, tkv)
        s_pad = _round_up(seq_len, align)
    nq = s_pad // tq
    nkv = s_pad // tkv

    vmem_limit = _vmem_limit_bytes(tq, tkv, d_in_p, d_out_p, cbytes)
    cparams_proj = pltpu.CompilerParams(
        dimension_semantics=("parallel",), vmem_limit_bytes=vmem_limit)
    cparams_attn = pltpu.CompilerParams(
        dimension_semantics=("parallel", "arbitrary"),
        vmem_limit_bytes=vmem_limit)

    # ---- wrapper-side packing / padding (one-time, cheap) ---------------------
    x_p = jnp.pad(x, ((0, s_pad - seq_len), (0, d_in_p - d_in))
                  ).astype(compute_dtype)
    # Pre-scaled W_query, padded and pre-cast (no per-step casts in-kernel).
    w_q = jnp.pad(w_query.astype(f32) * jnp.float32(scale),
                  ((0, d_in_p - d_in), (0, d_out_p - d_out))
                  ).astype(compute_dtype)
    # Fused [W_k | W_v], each in its own d_out_p-wide lane slot.
    w_kv = jnp.stack([w_key.astype(f32), w_value.astype(f32)], axis=1)
    w_kv = jnp.pad(w_kv, ((0, d_in_p - d_in), (0, 0), (0, d_out_p - d_out)))
    w_kv = w_kv.reshape(d_in_p, 2 * d_out_p).astype(compute_dtype)
    # Additive key mask: 0 for real keys, -1e30 for padded key rows.
    col = jnp.arange(s_pad, dtype=jnp.int32)[None, :]
    bias = jnp.where(col < seq_len, 0.0, -1e30).astype(f32)      # (1, s_pad)

    # ---- kernel 1: fused KV projection (outputs in compute_dtype) -------------
    k_p, v_p = pl.pallas_call(
        functools.partial(_kv_proj_kernel, d_out_p=d_out_p),
        out_shape=(jax.ShapeDtypeStruct((s_pad, d_out_p), compute_dtype),
                   jax.ShapeDtypeStruct((s_pad, d_out_p), compute_dtype)),
        grid=(nq,),
        in_specs=[
            pl.BlockSpec((tq, d_in_p), lambda i: (i, 0)),
            pl.BlockSpec((d_in_p, 2 * d_out_p), lambda i: (0, 0),
                         pipeline_mode=pl.Buffered(1)),          # constant block
        ],
        out_specs=(pl.BlockSpec((tq, d_out_p), lambda i: (i, 0)),
                   pl.BlockSpec((tq, d_out_p), lambda i: (i, 0))),
        compiler_params=cparams_proj,
    )(x_p, w_kv)

    # ---- kernel 2: attention (Q tiles parallel, KV tiles arbitrary/last) ------
    out_p = pl.pallas_call(
        functools.partial(_flash_attn_kernel, approx_recip=approx_recip),
        out_shape=jax.ShapeDtypeStruct((s_pad, d_out_p), f32),
        grid=(nq, nkv),
        in_specs=[
            pl.BlockSpec((tq, d_in_p), lambda i, j: (i, 0)),        # x tile
            pl.BlockSpec((d_in_p, d_out_p), lambda i, j: (0, 0),
                         pipeline_mode=pl.Buffered(1)),             # W_q resident
            pl.BlockSpec((tkv, d_out_p), lambda i, j: (j, 0)),      # K tile
            pl.BlockSpec((tkv, d_out_p), lambda i, j: (j, 0)),      # V tile
            pl.BlockSpec((1, tkv), lambda i, j: (0, j)),            # mask bias
        ],
        out_specs=pl.BlockSpec((tq, d_out_p), lambda i, j: (i, 0)),
        scratch_shapes=[
            pltpu.VMEM((tq, d_out_p), compute_dtype),   # q (scaled)
            pltpu.VMEM((tq, 1), jnp.float32),           # m (running max)
            pltpu.VMEM((tq, 1), jnp.float32),           # l (running denom)
            pltpu.VMEM((tq, d_out_p), jnp.float32),     # acc
        ],
        compiler_params=cparams_attn,
    )(x_p, w_q, k_p, v_p, bias)

    return out_p[:seq_len, :d_out]


# ---------------------------------------------------------------------------
# Reference (true-f32 precision) and tests
# ---------------------------------------------------------------------------
def _reference(x, wq, wk, wv):
    hp = jax.lax.Precision.HIGHEST
    q = jnp.dot(x, wq, precision=hp)
    k = jnp.dot(x, wk, precision=hp)
    v = jnp.dot(x, wv, precision=hp)
    s = jnp.dot(q, k.T, precision=hp) / jnp.sqrt(jnp.float32(wk.shape[-1]))
    w = jax.nn.softmax(s, axis=-1)
    return jnp.dot(w, v, precision=hp)


if __name__ == "__main__":
    # --- primary demo: module-consistent small shapes (seq=8, d_in=16, d_out=32)
    seq_len, d_in, d_out = 8, 16, 32
    kx, kq, kk, kv = jax.random.split(jax.random.PRNGKey(0), 4)

    # torch.rand -> uniform [0, 1)
    x = jax.random.uniform(kx, (seq_len, d_in), dtype=jnp.float32)
    w_query = jax.random.uniform(kq, (d_in, d_out), dtype=jnp.float32)
    w_key = jax.random.uniform(kk, (d_in, d_out), dtype=jnp.float32)
    w_value = jax.random.uniform(kv, (d_in, d_out), dtype=jnp.float32)

    ref = _reference(x, w_query, w_key, w_value)

    # Exact path: f32 MXU operands + exact reciprocal -> matches module numerics.
    out_f32 = jax.block_until_ready(
        self_attention_v1(x, w_query, w_key, w_value, compute_dtype=jnp.float32))
    assert out_f32.shape == (seq_len, d_out)
    assert jnp.allclose(out_f32, ref, rtol=1e-5, atol=1e-4)

    # Fast path: bf16 MXU operands (f32 accumulation) + EUP approx reciprocal.
    # Loose tolerance: all-positive U[0,1) data gives |scores| ~ 90, a worst
    # case for bf16 operand rounding (zero-mean embeddings behave far better).
    out_bf16 = jax.block_until_ready(
        self_attention_v1(x, w_query, w_key, w_value, compute_dtype=jnp.bfloat16))
    assert out_bf16.shape == (seq_len, d_out)
    assert jnp.allclose(out_bf16, ref, rtol=1e-1, atol=1e-1)

    # --- secondary check: seq padding, key masking, multi-query-tile grid,
    #     single KV block.
    seq2, din2, dout2 = 300, 40, 96
    k2 = jax.random.split(jax.random.PRNGKey(1), 4)
    x2 = jax.random.uniform(k2[0], (seq2, din2), dtype=jnp.float32)
    wq2 = jax.random.uniform(k2[1], (din2, dout2), dtype=jnp.float32)
    wk2 = jax.random.uniform(k2[2], (din2, dout2), dtype=jnp.float32)
    wv2 = jax.random.uniform(k2[3], (din2, dout2), dtype=jnp.float32)
    out2 = jax.block_until_ready(
        self_attention_v1(x2, wq2, wk2, wv2, compute_dtype=jnp.float32, tq=128))
    ref2 = _reference(x2, wq2, wk2, wv2)
    assert out2.shape == (seq2, dout2)
    # Larger all-positive accumulations make f32 MXU emulation vs XLA-HIGHEST
    # visible at ~1e-4..1e-3.
    assert jnp.allclose(out2, ref2, rtol=2e-3, atol=2e-3)

    # --- third check: exercises the flash-style KV grid axis (nkv > 1) with
    #     online softmax, plus padded keys in the last KV block.
    seq3, din3, dout3 = 1400, 64, 128
    k3 = jax.random.split(jax.random.PRNGKey(2), 4)
    x3 = 0.5 * jax.random.normal(k3[0], (seq3, din3), dtype=jnp.float32)
    wq3 = 0.5 * jax.random.normal(k3[1], (din3, dout3), dtype=jnp.float32)
    wk3 = 0.5 * jax.random.normal(k3[2], (din3, dout3), dtype=jnp.float32)
    wv3 = 0.5 * jax.random.normal(k3[3], (din3, dout3), dtype=jnp.float32)
    out3 = jax.block_until_ready(
        self_attention_v1(x3, wq3, wk3, wv3, compute_dtype=jnp.float32,
                          tq=256, kv_block=512))
    ref3 = _reference(x3, wq3, wk3, wv3)
    assert out3.shape == (seq3, dout3)
    assert jnp.allclose(out3, ref3, rtol=2e-3, atol=2e-3)

    print("KERNEL_OK")
</pallas_src>

<mosaic_0001>
module attributes {stable_mosaic.version = 11 : i64} {
  func.func @_kv_proj_kernel(%arg0: i32, %arg1: memref<8x128xf32, #tpu.memory_space<vmem>>, %arg2: memref<128x256xf32, #tpu.memory_space<vmem>>, %arg3: memref<8x128xf32, #tpu.memory_space<vmem>>, %arg4: memref<8x128xf32, #tpu.memory_space<vmem>>) attributes {dimension_semantics = [#tpu.dimension_semantics<parallel>], iteration_bounds = array<i64: 1>, scalar_prefetch = 0 : i64, scratch_operands = 0 : i64, tpu.core_type = #tpu.core_type<tc>, window_params = [{transform_indices = @transform_0, window_bounds = array<i64: 8, 128>}, {pipeline_mode = #tpu.pipeline_mode<synchronous>, transform_indices = @transform_1, window_bounds = array<i64: 128, 256>}, {transform_indices = @transform_2, window_bounds = array<i64: 8, 128>}, {transform_indices = @transform_3, window_bounds = array<i64: 8, 128>}]} {
    %c0 = arith.constant 0 : index
    %c0_0 = arith.constant 0 : index
    %0 = vector.load %arg1[%c0, %c0_0] : memref<8x128xf32, #tpu.memory_space<vmem>>, vector<8x128xf32>
    %c0_1 = arith.constant 0 : index
    %c0_2 = arith.constant 0 : index
    %1 = vector.load %arg2[%c0_1, %c0_2] : memref<128x256xf32, #tpu.memory_space<vmem>>, vector<128x256xf32>
    %cst = arith.constant dense<0.000000e+00> : vector<8x256xf32>
    %2 = tpu.matmul %0, %1, %cst {dimension_numbers = #tpu.dot_dimension_numbers<[1], [0], [0], [1], [0, 0, 1, 1], [], []>} : vector<8x128xf32>, vector<128x256xf32>, vector<8x256xf32> -> vector<8x256xf32>
    %3 = vector.extract_strided_slice %2 {offsets = [0, 0], sizes = [8, 128], strides = [1, 1]} : vector<8x256xf32> to vector<8x128xf32>
    %c0_3 = arith.constant 0 : index
    %c0_4 = arith.constant 0 : index
    %4 = vector.load %arg3[%c0_3, %c0_4] : memref<8x128xf32, #tpu.memory_space<vmem>>, vector<8x128xf32>
    tpu.vector_store %arg3[%c0_3, %c0_4], %3 {strides = array<i32>} : memref<8x128xf32, #tpu.memory_space<vmem>>, vector<8x128xf32>,
    %5 = vector.extract_strided_slice %2 {offsets = [0, 128], sizes = [8, 128], strides = [1, 1]} : vector<8x256xf32> to vector<8x128xf32>
    %c0_5 = arith.constant 0 : index
    %c0_6 = arith.constant 0 : index
    %6 = vector.load %arg4[%c0_5, %c0_6] : memref<8x128xf32, #tpu.memory_space<vmem>>, vector<8x128xf32>
    tpu.vector_store %arg4[%c0_5, %c0_6], %5 {strides = array<i32>} : memref<8x128xf32, #tpu.memory_space<vmem>>, vector<8x128xf32>,
    return
  }
  func.func @transform_0(%arg0: i32) -> (i32, i32) {
    %c0_i32 = arith.constant 0 : i32
    %c0_i32_0 = arith.constant 0 : i32
    return %arg0, %c0_i32 : i32, i32
  }
  func.func @transform_1(%arg0: i32) -> (i32, i32) {
    %c0_i32 = arith.constant 0 : i32
    %c0_i32_0 = arith.constant 0 : i32
    %c0_i32_1 = arith.constant 0 : i32
    return %c0_i32, %c0_i32_0 : i32, i32
  }
  func.func @transform_2(%arg0: i32) -> (i32, i32) {
    %c0_i32 = arith.constant 0 : i32
    %c0_i32_0 = arith.constant 0 : i32
    return %arg0, %c0_i32 : i32, i32
  }
  func.func @transform_3(%arg0: i32) -> (i32, i32) {
    %c0_i32 = arith.constant 0 : i32
    %c0_i32_0 = arith.constant 0 : i32
    return %arg0, %c0_i32 : i32, i32
  }
}

</mosaic_0001>

<llo_original>
// kernel: tpu_custom_call.1
$region0: #{tpu_custom_call.1}
  #allocation0 [shape = 'u32[]', space=smem, size = 0x4, offset = 0x4, fixed_abs, tag = 'smem constant byte address 0x4 - core index']
  #allocation1 [shape = 'u32[144,128]{1,0:T(1,128)}', space=vmem, size = 0x12000, scoped, tag = 'internal scratch']
  %s0 = inlined_call_operand.hbm [shape: f32[8,128], index: 0, kind: input, shape index: {}]
  %s1 = inlined_call_operand.hbm [shape: f32[128,256], index: 1, kind: input, shape index: {}]
  %s2 = inlined_call_operand.hbm [shape: f32[8,128], index: 2, kind: output, shape index: {0}]
  %s3 = inlined_call_operand.hbm [shape: f32[8,128], index: 3, kind: output, shape index: {1}]
  %4 = xla_tuple %s2, %s3
  %s5 = sld [smem:[#allocation0]]
  $region34: #{tpu_custom_call.1} parent=0
    _
  %s7 = ssub.s32 1, %s5
  %s8 = scalar_select 0, %s7, %s5
  $region1: #{tpu_custom_call.1} parent=0
    #allocation2 [shape = 'u8[4096]{0}', space=vmem, size = 0x1000, scoped, tag = 'input window, operand 0, single buffered']
    #allocation3 [shape = 's32[1]{0}', space=sflag, size = 0x4, scoped, tag = 'scoped memory for tpu_custom_call.1']
    #allocation4 [shape = 's32[1]{0}', space=sflag, size = 0x4, scoped, tag = 'scoped memory for tpu_custom_call.1']
    #allocation5 [shape = 'u8[131072]{0}', space=vmem, size = 0x20000, scoped, tag = 'input window, operand 1, single buffered']
    #allocation6 [shape = 's32[1]{0}', space=sflag, size = 0x4, scoped, tag = 'scoped memory for tpu_custom_call.1']
    #allocation7 [shape = 'u8[4096]{0}', space=vmem, size = 0x1000, scoped, tag = 'output window, operand 0, single buffered']
    #allocation8 [shape = 'u8[4096]{0}', space=vmem, size = 0x1000, scoped, tag = 'output window, operand 1, single buffered']
    #allocation9 [shape = 's32[1]{0}', space=sflag, size = 0x4, scoped, tag = 'scoped memory for tpu_custom_call.1']
    %9 = vsyncpa [#allocation3], 0
    %10 = vsyncpa [#allocation6], 0
    %11 = vsyncpa [#allocation4], 0
    %12 = vsyncpa [#allocation9], 0
    // Predicated region
    $region2: #{tpu_custom_call.1} parent=1 // pred_check
      _
    $region3: #{tpu_custom_call.1} parent=1 // pred_check_branch
      %14 = sbr.rel (0) target = $region5
    $region4: #{tpu_custom_call.1} parent=1 // pred_region
      %s16 = ssub.s32 128, 128
      %17 = vsyncadd [#allocation3], %s16
      %s19 = sshll.u32 [#allocation2], 4
      %s20 = int_to_ptr.vmem [resolvable:$true] %s19
      %22 = dma.hbm_to_vmem [thread:$0]  %s0, 128, %s20, [#allocation3]
    $region5: #{tpu_custom_call.1} parent=1 // pred_fallthru
      _
    // Predicated region
    $region6: #{tpu_custom_call.1} parent=1 // pred_check
      _
    $region7: #{tpu_custom_call.1} parent=1 // pred_check_branch
      %24 = sbr.rel (0) target = $region9
    $region8: #{tpu_custom_call.1} parent=1 // pred_region
      %s26 = ssub.s32 4096, 4096
      %27 = vsyncadd [#allocation6], %s26
      %s28 = sshll.u32 [#allocation5], 4
      %s29 = int_to_ptr.vmem [resolvable:$true] %s28
      %34 = dma.hbm_to_vmem [thread:$0]  %s1, 4096, %s29, [#allocation6], 256, 256, 16
    $region9: #{tpu_custom_call.1} parent=1 // pred_fallthru
      _
    // Predicated region
    $region10: #{tpu_custom_call.1} parent=1 // pred_check
      _
    $region11: #{tpu_custom_call.1} parent=1 // pred_check_branch
      %36 = sbr.rel (0) target = $region13
    $region12: #{tpu_custom_call.1} parent=1 // pred_region
      %37 = dma.done [#allocation3], 128
    $region13: #{tpu_custom_call.1} parent=1 // pred_fallthru
      _
    // Predicated region
    $region14: #{tpu_custom_call.1} parent=1 // pred_check
      _
    $region15: #{tpu_custom_call.1} parent=1 // pred_check_branch
      %39 = sbr.rel (0) target = $region17
    $region16: #{tpu_custom_call.1} parent=1 // pred_region
      %40 = dma.done [#allocation6], 4096
    $region17: #{tpu_custom_call.1} parent=1 // pred_fallthru
      _
    %v41 = vld [vmem:[#allocation2] sm:$0xff]
    %v42 = vld [vmem:[#allocation5] sm:$0xff]
    %v43 = vld [vmem:[#allocation5 + $0x8] sm:$0xff]
    %v44 = vld [vmem:[#allocation5 + $0x10] sm:$0xff]
    %v45 = vld [vmem:[#allocation5 + $0x18] sm:$0xff]
    %v46 = vld [vmem:[#allocation5 + $0x20] sm:$0xff]
    %v47 = vld [vmem:[#allocation5 + $0x28] sm:$0xff]
    %v48 = vld [vmem:[#allocation5 + $0x30] sm:$0xff]
    %v49 = vld [vmem:[#allocation5 + $0x38] sm:$0xff]
    %v50 = vld [vmem:[#allocation5 + $0x40] sm:$0xff]
    %v51 = vld [vmem:[#allocation5 + $0x48] sm:$0xff]
    %v52 = vld [vmem:[#allocation5 + $0x50] sm:$0xff]
    %v53 = vld [vmem:[#allocation5 + $0x58] sm:$0xff]
    %v54 = vld [vmem:[#allocation5 + $0x60] sm:$0xff]
    %v55 = vld [vmem:[#allocation5 + $0x68] sm:$0xff]
    %v56 = vld [vmem:[#allocation5 + $0x70] sm:$0xff]
    %v57 = vld [vmem:[#allocation5 + $0x78] sm:$0xff]
    %v58 = vld [vmem:[#allocation5 + $0x80] sm:$0xff]
    %v59 = vld [vmem:[#allocation5 + $0x88] sm:$0xff]
    %v60 = vld [vmem:[#allocation5 + $0x90] sm:$0xff]
    %v61 = vld [vmem:[#allocation5 + $0x98] sm:$0xff]
    %v62 = vld [vmem:[#allocation5 + $0xa0] sm:$0xff]
    %v63 = vld [vmem:[#allocation5 + $0xa8] sm:$0xff]
    %v64 = vld [vmem:[#allocation5 + $0xb0] sm:$0xff]
    %v65 = vld [vmem:[#allocation5 + $0xb8] sm:$0xff]
    %v66 = vld [vmem:[#allocation5 + $0xc0] sm:$0xff]
    %v67 = vld [vmem:[#allocation5 + $0xc8] sm:$0xff]
    %v68 = vld [vmem:[#allocation5 + $0xd0] sm:$0xff]
    %v69 = vld [vmem:[#allocation5 + $0xd8] sm:$0xff]
    %v70 = vld [vmem:[#allocation5 + $0xe0] sm:$0xff]
    %v71 = vld [vmem:[#allocation5 + $0xe8] sm:$0xff]
    %v72 = vld [vmem:[#allocation5 + $0xf0] sm:$0xff]
    %v73 = vld [vmem:[#allocation5 + $0xf8] sm:$0xff]
    %74 = vmatprep.subr.mxu0 %v43
    %75 = vmatpush1.msra.mxu0 %v42
    %76 = vmatprep.subr.mxu0 %v45
    %77 = vmatpush1.msra.mxu0 %v44
    %78 = vmatprep.subr.mxu0 %v47
    %79 = vmatpush1.msra.mxu0 %v46
    %80 = vmatprep.subr.mxu0 %v49
    %81 = vmatpush1.msra.mxu0 %v48
    %82 = vmatprep.subr.mxu0 %v51
    %83 = vmatpush1.msra.mxu0 %v50
    %84 = vmatprep.subr.mxu0 %v53
    %85 = vmatpush1.msra.mxu0 %v52
    %86 = vmatprep.subr.mxu0 %v55
    %87 = vmatpush1.msra.mxu0 %v54
    %88 = vmatprep.subr.mxu0 %v57
    %89 = vmatpush1.msra.mxu0 %v56
    %90 = vmatprep.subr.mxu0 %v59
    %91 = vmatpush1.msra.mxu0 %v58
    %92 = vmatprep.subr.mxu0 %v61
    %93 = vmatpush1.msra.mxu0 %v60
    %94 = vmatprep.subr.mxu0 %v63
    %95 = vmatpush1.msra.mxu0 %v62
    %96 = vmatprep.subr.mxu0 %v65
    %97 = vmatpush1.msra.mxu0 %v64
    %98 = vmatprep.subr.mxu0 %v67
    %99 = vmatpush1.msra.mxu0 %v66
    %100 = vmatprep.subr.mxu0 %v69
    %101 = vmatpush1.msra.mxu0 %v68
    %102 = vmatprep.subr.mxu0 %v71
    %103 = vmatpush1.msra.mxu0 %v70
    %104 = vmatprep.subr.mxu0 %v73
    %105 = vmatpush1.msra.mxu0 %v72
    %106 = vmatprep.subr.mxu0 0.0
    %107 = vmatpush1.msra.mxu0 0.0
    %108 = vmatprep.subr.mxu0 0.0
    %109 = vmatpush1.msra.mxu0 0.0
    %110 = vmatprep.subr.mxu0 0.0
    %111 = vmatpush1.msra.mxu0 0.0
    %112 = vmatprep.subr.mxu0 0.0
    %113 = vmatpush1.msra.mxu0 0.0
    %114 = vmatprep.subr.mxu0 0.0
    %115 = vmatpush1.msra.mxu0 0.0
    %116 = vmatprep.subr.mxu0 0.0
    %117 = vmatpush1.msra.mxu0 0.0
    %118 = vmatprep.subr.mxu0 0.0
    %119 = vmatpush1.msra.mxu0 0.0
    %120 = vmatprep.subr.mxu0 0.0
    %121 = vmatpush1.msra.mxu0 0.0
    %122 = vmatprep.subr.mxu0 0.0
    %123 = vmatpush1.msra.mxu0 0.0
    %124 = vmatprep.subr.mxu0 0.0
    %125 = vmatpush1.msra.mxu0 0.0
    %126 = vmatprep.subr.mxu0 0.0
    %127 = vmatpush1.msra.mxu0 0.0
    %128 = vmatprep.subr.mxu0 0.0
    %129 = vmatpush1.msra.mxu0 0.0
    %130 = vmatprep.subr.mxu0 0.0
    %131 = vmatpush1.msra.mxu0 0.0
    %132 = vmatprep.subr.mxu0 0.0
    %133 = vmatpush1.msra.mxu0 0.0
    %134 = vmatprep.subr.mxu0 0.0
    %135 = vmatpush1.msra.mxu0 0.0
    %136 = vmatprep.subr.mxu0 0.0
    %137 = vmatpush1.msra.mxu0 0.0
    %138 = vmatprep.mubr.f32.mxu0 0.0
    %139 = vmatmul.mubr.f32.gmra.mrb[0].mxu0 %v41
    %v140 = vpop.f32.mrb[0].mxu0
    %v141 = vadd.f32 0.0, %v140
    %v142 = vpop.f32.mrb[0].mxu0
    %v143 = vadd.f32 0.0, %v142
    %144 = vdwg.mxu0
    %145 = vst [vmem:[#allocation7] sm:$0xff] %v141
    %146 = vst [vmem:[#allocation8] sm:$0xff] %v143
    // Predicated region
    $region18: #{tpu_custom_call.1} parent=1 // pred_check
      _
    $region19: #{tpu_custom_call.1} parent=1 // pred_check_branch
      %148 = sbr.rel (0) target = $region21
    $region20: #{tpu_custom_call.1} parent=1 // pred_region
      %s150 = ssub.s32 128, 128
      %151 = vsyncadd [#allocation4], %s150
      %s153 = sshll.u32 [#allocation7], 4
      %s154 = int_to_ptr.vmem [resolvable:$true] %s153
      %156 = dma.vmem_to_hbm [thread:$0]  %s154, 128, %s2, [#allocation4]
    $region21: #{tpu_custom_call.1} parent=1 // pred_fallthru
      _
    // Predicated region
    $region22: #{tpu_custom_call.1} parent=1 // pred_check
      _
    $region23: #{tpu_custom_call.1} parent=1 // pred_check_branch
      %158 = sbr.rel (0) target = $region25
    $region24: #{tpu_custom_call.1} parent=1 // pred_region
      %s160 = ssub.s32 128, 128
      %161 = vsyncadd [#allocation9], %s160
      %s163 = sshll.u32 [#allocation8], 4
      %s164 = int_to_ptr.vmem [resolvable:$true] %s163
      %166 = dma.vmem_to_hbm [thread:$0]  %s164, 128, %s3, [#allocation9]
    $region25: #{tpu_custom_call.1} parent=1 // pred_fallthru
      _
    // Predicated region
    $region26: #{tpu_custom_call.1} parent=1 // pred_check
      _
    $region27: #{tpu_custom_call.1} parent=1 // pred_check_branch
      %168 = sbr.rel (0) target = $region29
    $region28: #{tpu_custom_call.1} parent=1 // pred_region
      %169 = dma.done [#allocation4], 128
    $region29: #{tpu_custom_call.1} parent=1 // pred_fallthru
      _
    // Predicated region
    $region30: #{tpu_custom_call.1} parent=1 // pred_check
      _
    $region31: #{tpu_custom_call.1} parent=1 // pred_check_branch
      %171 = sbr.rel (0) target = $region33
    $region32: #{tpu_custom_call.1} parent=1 // pred_region
      %172 = dma.done [#allocation9], 128
    $region33: #{tpu_custom_call.1} parent=1 // pred_fallthru
      _
    %173 = vsyncpa [#allocation3], 1
    %174 = vsyncpa [#allocation6], 1
    %175 = vsyncpa [#allocation4], 1
    %176 = vsyncpa [#allocation9], 1

</llo_original>
